<compile_context>
chip_gen: v7x
topology: tpu7x:2x2x1
jax: 0.10.0
libtpu: 0.0.40
codegen_flags: <defaults>
</compile_context>

<pallas_src>
import jax
import jax.numpy as jnp
from jax.experimental import pallas as pl
from jax.experimental.pallas import tpu as pltpu


# ---------------------------------------------------------------------------
# Kernel
# ---------------------------------------------------------------------------
def _tanh_scale_kernel(scale_ref, x_ref, o_ref):
    # EUP tanh + VPU scale.  Upcast in-register so HBM/DMA stays at the
    # input width; cast back to the storage dtype before the store.
    x = x_ref[...].astype(jnp.float32)
    o_ref[...] = (jnp.tanh(x) * scale_ref[0]).astype(o_ref.dtype)


_TARGET_BLOCK_BYTES = 4 * 1024 * 1024   # per-buffer tile; 2 bufs x 2 arrays ~= 16 MiB
_VMEM_LIMIT_BYTES = 48 * 1024 * 1024    # > v5e's 16 MiB default, < v7x's 64 MiB physical


def _sublane_granule(itemsize: int) -> int:
    # Packed-sublane granularity: f32 -> 8, bf16/f16 -> 16, int8/fp8 -> 32.
    return {4: 8, 2: 16, 1: 32}.get(itemsize, 8)


def _tanh_scale_2d(x2d: jax.Array, scale_arr: jax.Array) -> jax.Array:
    rows, lanes = x2d.shape
    itemsize = x2d.dtype.itemsize
    granule = _sublane_granule(itemsize)

    # Biggest block that hits the target bytes, rounded to the dtype's packed
    # sublane granule.  If the whole slab is smaller, take it in one step
    # (block == full dim is always a legal BlockSpec).
    target_rows = _TARGET_BLOCK_BYTES // (lanes * itemsize)
    target_rows = max(granule, (target_rows // granule) * granule)
    block_rows = rows if rows <= target_rows else target_rows
    grid = (pl.cdiv(rows, block_rows),)

    return pl.pallas_call(
        _tanh_scale_kernel,
        out_shape=jax.ShapeDtypeStruct((rows, lanes), x2d.dtype),
        grid_spec=pltpu.PrefetchScalarGridSpec(
            num_scalar_prefetch=1,
            grid=grid,
            in_specs=[pl.BlockSpec((block_rows, lanes), lambda i, s: (i, 0))],
            out_specs=pl.BlockSpec((block_rows, lanes), lambda i, s: (i, 0)),
        ),
        compiler_params=pltpu.CompilerParams(
            dimension_semantics=("parallel",),
            vmem_limit_bytes=_VMEM_LIMIT_BYTES,
        ),
    )(scale_arr, x2d)


# ---------------------------------------------------------------------------
# Wrapper (TanhScale.forward)
# ---------------------------------------------------------------------------
def tanh_scale(x: jax.Array, scale=1.0) -> jax.Array:
    """Equivalent of TanhScale.forward: tanh(x) * scale."""
    orig_shape = x.shape

    # Match torch semantics: tanh promotes integer/bool inputs to float.
    if not jnp.issubdtype(x.dtype, jnp.floating):
        x = x.astype(jnp.float32)

    n = x.size
    if n == 0:
        return jnp.zeros(orig_shape, x.dtype)

    scale_arr = jnp.asarray(scale, dtype=jnp.float32).reshape((1,))

    # Widest lane count that divides n -> free reshape, no padding passes.
    lanes = None
    for cand in (1024, 512, 256, 128):
        if n % cand == 0:
            lanes = cand
            break

    if lanes is not None:
        x2d = x.reshape(n // lanes, lanes)               # free (contiguous) reshape
        out2d = _tanh_scale_2d(x2d, scale_arr)
        return out2d.reshape(orig_shape)

    # Rare fallback (n not a multiple of 128): pad only the flat tail to a
    # full lane row; costs one extra HBM pass, hit only for odd sizes.
    lanes = 128
    flat = x.reshape(-1)
    pad = (-n) % lanes
    flat = jnp.pad(flat, (0, pad))
    out2d = _tanh_scale_2d(flat.reshape(-1, lanes), scale_arr)
    return out2d.reshape(-1)[:n].reshape(orig_shape)


# ---------------------------------------------------------------------------
# Self-test
# ---------------------------------------------------------------------------
if __name__ == "__main__":
    key = jax.random.PRNGKey(0)
    scale = 2.5

    # 1) Small NCHW input consistent with the module's typical usage (f32).
    x = jax.random.normal(key, (2, 4, 16, 16), dtype=jnp.float32)
    y = jax.block_until_ready(tanh_scale(x, scale=scale))
    y_ref = jnp.tanh(x) * scale
    assert y.shape == x.shape and y.dtype == x.dtype
    assert jnp.allclose(y, y_ref, atol=1e-6, rtol=1e-6)

    # 2) bf16 input — stays bf16 on HBM, f32 compute in-register.
    xb = jax.random.normal(jax.random.PRNGKey(1), (2, 4, 16, 16), dtype=jnp.bfloat16)
    yb = jax.block_until_ready(tanh_scale(xb, scale=scale))
    yb_ref = (jnp.tanh(xb.astype(jnp.float32)) * scale).astype(jnp.bfloat16)
    assert yb.shape == xb.shape and yb.dtype == xb.dtype
    assert jnp.allclose(yb.astype(jnp.float32), yb_ref.astype(jnp.float32),
                        atol=5e-2, rtol=5e-2)

    # 3) Odd size (not a multiple of 128) — exercises the tail-pad fallback.
    xo = jax.random.normal(jax.random.PRNGKey(2), (3, 5, 7), dtype=jnp.float32)
    yo = jax.block_until_ready(tanh_scale(xo, scale=scale))
    assert jnp.allclose(yo, jnp.tanh(xo) * scale, atol=1e-6, rtol=1e-6)

    print("KERNEL_OK")
</pallas_src>

<mosaic_0001>
module attributes {stable_mosaic.version = 11 : i64} {
  func.func @_tanh_scale_kernel(%arg0: i32, %arg1: memref<1xf32, #tpu.memory_space<smem>>, %arg2: memref<2x1024xf32, #tpu.memory_space<vmem>>, %arg3: memref<2x1024xf32, #tpu.memory_space<vmem>>) attributes {dimension_semantics = [#tpu.dimension_semantics<parallel>], iteration_bounds = array<i64: 1>, scalar_prefetch = 1 : i64, scratch_operands = 0 : i64, tpu.core_type = #tpu.core_type<tc>, window_params = [{transform_indices = @transform_0, window_bounds = array<i64: 2, 1024>}, {transform_indices = @transform_1, window_bounds = array<i64: 2, 1024>}]} {
    %c0 = arith.constant 0 : index
    %c0_0 = arith.constant 0 : index
    %0 = vector.load %arg2[%c0, %c0_0] : memref<2x1024xf32, #tpu.memory_space<vmem>>, vector<2x1024xf32>
    %1 = math.tanh %0 : vector<2x1024xf32>
    %c0_1 = arith.constant 0 : index
    %2 = memref.load %arg1[%c0_1] : memref<1xf32, #tpu.memory_space<smem>>
    %3 = vector.broadcast %2 : f32 to vector<2x1024xf32>
    %4 = arith.mulf %1, %3 : vector<2x1024xf32>
    %c0_2 = arith.constant 0 : index
    %c0_3 = arith.constant 0 : index
    %5 = vector.load %arg3[%c0_2, %c0_3] : memref<2x1024xf32, #tpu.memory_space<vmem>>, vector<2x1024xf32>
    tpu.vector_store %arg3[%c0_2, %c0_3], %4 {strides = array<i32>} : memref<2x1024xf32, #tpu.memory_space<vmem>>, vector<2x1024xf32>,
    return
  }
  func.func @transform_0(%arg0: i32, %arg1: memref<1xf32, #tpu.memory_space<smem>>) -> (i32, i32) {
    %c0_i32 = arith.constant 0 : i32
    %c0_i32_0 = arith.constant 0 : i32
    return %arg0, %c0_i32 : i32, i32
  }
  func.func @transform_1(%arg0: i32, %arg1: memref<1xf32, #tpu.memory_space<smem>>) -> (i32, i32) {
    %c0_i32 = arith.constant 0 : i32
    %c0_i32_0 = arith.constant 0 : i32
    return %arg0, %c0_i32 : i32, i32
  }
}

</mosaic_0001>

<llo_original>
// kernel: tpu_custom_call.1
$region0: #{tpu_custom_call.1}
  #allocation0 [shape = 'u32[]', space=smem, size = 0x4, offset = 0x4, fixed_abs, tag = 'smem constant byte address 0x4 - core index']
  #allocation1 [shape = 'u32[144,128]{1,0:T(1,128)}', space=vmem, size = 0x12000, scoped, tag = 'internal scratch']
  #allocation2 [shape = 's32[1]{0}', space=sflag, size = 0x4, scoped, tag = 'scoped memory for tpu_custom_call.1']
  #allocation3 [shape = 'f32[1]{0:T(128)S(6)}', space=smem, size = 0x200, scoped, tag = 'prefetched SMEM operand 0']
  %s0 = inlined_call_operand.<no memory space> [shape: f32[1], index: 0, kind: input, shape index: {}]
  %s1 = inlined_call_operand.hbm [shape: f32[2,1024], index: 1, kind: input, shape index: {}]
  %s2 = inlined_call_operand.hbm [shape: f32[2,1024], index: 2, kind: output, shape index: {}]
  %s3 = sld [smem:[#allocation0]]
  $region18: #{tpu_custom_call.1} parent=0
    _
  %s5 = ssub.s32 1, %s3
  %s6 = scalar_select 0, %s5, %s3
  %7 = sst [smem:[#allocation3]] %s0
  $region1: #{tpu_custom_call.1} parent=0
    #allocation4 [shape = 'u8[8192]{0}', space=vmem, size = 0x2000, scoped, tag = 'input window, operand 1, single buffered']
    #allocation5 [shape = 's32[1]{0}', space=sflag, size = 0x4, scoped, tag = 'scoped memory for tpu_custom_call.1']
    #allocation6 [shape = 's32[1]{0}', space=sflag, size = 0x4, scoped, tag = 'scoped memory for tpu_custom_call.1']
    #allocation7 [shape = 'u8[8192]{0}', space=vmem, size = 0x2000, scoped, tag = 'output window, operand 0, single buffered']
    %8 = vsyncpa [#allocation5], 0
    %9 = vsyncpa [#allocation6], 0
    // Predicated region
    $region2: #{tpu_custom_call.1} parent=1 // pred_check
      _
    $region3: #{tpu_custom_call.1} parent=1 // pred_check_branch
      %11 = sbr.rel (0) target = $region5
    $region4: #{tpu_custom_call.1} parent=1 // pred_region
      %s13 = ssub.s32 256, 256
      %14 = vsyncadd [#allocation5], %s13
      %s16 = sshll.u32 [#allocation4], 4
      %s17 = int_to_ptr.vmem [resolvable:$true] %s16
      %19 = dma.hbm_to_vmem [thread:$0]  %s1, 256, %s17, [#allocation5]
    $region5: #{tpu_custom_call.1} parent=1 // pred_fallthru
      _
    // Predicated region
    $region6: #{tpu_custom_call.1} parent=1 // pred_check
      _
    $region7: #{tpu_custom_call.1} parent=1 // pred_check_branch
      %21 = sbr.rel (0) target = $region9
    $region8: #{tpu_custom_call.1} parent=1 // pred_region
      %22 = dma.done [#allocation5], 256
    $region9: #{tpu_custom_call.1} parent=1 // pred_fallthru
      _
    %v23 = vld [vmem:[#allocation4] sm:$0xff]
    %v24 = vld [vmem:[#allocation4 + $0x8] sm:$0xff]
    %v25 = vtanh.pop %v23
    %v26 = vtanh.pop %v24
    %s27 = sld [smem:[#allocation3]]
    %v28 = vstv %s27
    %v29 = vmul.f32 %v25, %v28
    %v30 = vmul.f32 %v26, %v28
    %31 = vst [vmem:[#allocation7] sm:$0xff] %v29
    %32 = vst [vmem:[#allocation7 + $0x8] sm:$0xff] %v30
    // Predicated region
    $region10: #{tpu_custom_call.1} parent=1 // pred_check
      _
    $region11: #{tpu_custom_call.1} parent=1 // pred_check_branch
      %34 = sbr.rel (0) target = $region13
    $region12: #{tpu_custom_call.1} parent=1 // pred_region
      %s36 = ssub.s32 256, 256
      %37 = vsyncadd [#allocation6], %s36
      %s39 = sshll.u32 [#allocation7], 4
      %s40 = int_to_ptr.vmem [resolvable:$true] %s39
      %42 = dma.vmem_to_hbm [thread:$0]  %s40, 256, %s2, [#allocation6]
    $region13: #{tpu_custom_call.1} parent=1 // pred_fallthru
      _
    // Predicated region
    $region14: #{tpu_custom_call.1} parent=1 // pred_check
      _
    $region15: #{tpu_custom_call.1} parent=1 // pred_check_branch
      %44 = sbr.rel (0) target = $region17
    $region16: #{tpu_custom_call.1} parent=1 // pred_region
      %45 = dma.done [#allocation6], 256
    $region17: #{tpu_custom_call.1} parent=1 // pred_fallthru
      _
    %46 = vsyncpa [#allocation5], 1
    %47 = vsyncpa [#allocation6], 1

</llo_original>
